<compile_context>
chip_gen: v6e
topology: v6e:2x2x1
jax: 0.10.0
libtpu: 0.0.40
codegen_flags: <defaults>
</compile_context>

<pallas_src>
import math
from functools import partial
from itertools import permutations

import jax
import jax.numpy as jnp
import numpy as np
from jax.experimental import pallas as pl
from jax.experimental.pallas import tpu as pltpu

PI = math.pi
HALF_PI = math.pi / 2.0
INV_PI = 1.0 / math.pi
BALANCE_FACTOR = 1.0

_SUBLANES = 8
_LANES = 128
_TILE_QUANTUM = _SUBLANES * _LANES      # 1024 batch elements = one (8,128) tile
_MAX_TILE = 4096                        # batch elements per grid step (cap)


def _round_up(x, m):
    return ((x + m - 1) // m) * m


def _choose_tile(B):
    """Batch-elements per grid step: multiple of 1024, capped, >=2 steps when big."""
    b = _round_up(B, _TILE_QUANTUM)
    if b <= _MAX_TILE:
        return b                        # single step, tiny problem
    half = _round_up((b + 1) // 2, _TILE_QUANTUM)
    return min(_MAX_TILE, half)         # >=2 parallel steps for v7x dual-TC


def _wrap_half_pi(x):
    # (x + pi/2) mod pi - pi/2 with mul+floor+mul+sub (VPU only, no f32 divide).
    # TODO(synk): floor-based wrap can differ from the reference fmod by ~pi when
    # the shifted error sits within a few ULP of a multiple of pi (boundary-only).
    y = x + HALF_PI
    return y - PI * jnp.floor(y * INV_PI) - HALF_PI


# ----------------------------------------------------------------------------
# Kernels  (input slab layout:  [0:M]=angles_pred, [M:2M]=angles,
#                               [2M:3M]=ranges_pred, [3M:4M]=ranges)
# ----------------------------------------------------------------------------
def _rmspe_angle_kernel(perms, inv_sqrt_m, in_ref, out_ref):
    M = len(perms[0])
    ap = [in_ref[i] for i in range(M)]            # each (R, 128), batch-dense
    a = [in_ref[M + j] for j in range(M)]

    # All M*M wrapped squared differences (shared by every permutation).
    d2 = [[None] * M for _ in range(M)]
    for i in range(M):
        for j in range(M):
            e = _wrap_half_pi(ap[i] - a[j])
            d2[i][j] = e * e

    # Per-permutation sum of squares + running minimum (pure VPU, no XLU reduce).
    best = None
    for p in perms:
        ss = d2[p[0]][0]
        for j in range(1, M):
            ss = ss + d2[p[j]][j]
        best = ss if best is None else jnp.minimum(best, ss)

    out_ref[...] = jnp.sqrt(best) * inv_sqrt_m


def _rmspe_full_kernel(perms, inv_sqrt_m, balance, in_ref, out_ref):
    M = len(perms[0])
    ap = [in_ref[i] for i in range(M)]
    a = [in_ref[M + j] for j in range(M)]
    rp = [in_ref[2 * M + i] for i in range(M)]
    r = [in_ref[3 * M + j] for j in range(M)]

    d2a = [[None] * M for _ in range(M)]
    d2r = [[None] * M for _ in range(M)]
    for i in range(M):
        for j in range(M):
            ea = _wrap_half_pi(ap[i] - a[j])
            d2a[i][j] = ea * ea
            er = rp[i] - r[j]
            d2r[i][j] = er * er

    # Running minimum over permutations; strict "<" keeps the FIRST tied
    # permutation, matching torch.min's tie-break used for the ranges gather.
    best_a = None
    best_r = None
    for p in perms:
        ss_a = d2a[p[0]][0]
        ss_r = d2r[p[0]][0]
        for j in range(1, M):
            ss_a = ss_a + d2a[p[j]][j]
            ss_r = ss_r + d2r[p[j]][j]
        if best_a is None:
            best_a, best_r = ss_a, ss_r
        else:
            take = ss_a < best_a
            best_a = jnp.where(take, ss_a, best_a)
            best_r = jnp.where(take, ss_r, best_r)

    rms_a = jnp.sqrt(best_a) * inv_sqrt_m
    rms_r = jnp.sqrt(best_r) * inv_sqrt_m
    out_ref[0] = balance * rms_a + (1.0 - balance) * rms_r
    out_ref[1] = rms_a
    out_ref[2] = rms_r


# ----------------------------------------------------------------------------
# Wrapper
# ----------------------------------------------------------------------------
def _pack(arrays, B, B_pad):
    """(B, M) inputs -> one (K, Rtot, 128) slab array, batch dense on (row, lane)."""
    cols = [jnp.asarray(a, jnp.float32).T for a in arrays]    # each (M, B)
    x = jnp.concatenate(cols, axis=0)                         # (K, B)
    if B_pad != B:
        x = jnp.pad(x, ((0, 0), (0, B_pad - B)))
    return x.reshape(x.shape[0], B_pad // _LANES, _LANES)


def rmspe_loss(angles_pred, angles, ranges_pred=None, ranges=None,
               balance_factor=BALANCE_FACTOR):
    # TODO(synk): the PyTorch module keeps balance_factor as a float64
    # nn.Parameter; TPU Pallas has no f64 vector path so it is kept in float32.
    B, M = angles_pred.shape
    perms = list(permutations(range(M)))
    inv_sqrt_m = float(1.0 / math.sqrt(M))

    TB = _choose_tile(B)                 # batch elements per grid step
    B_pad = _round_up(B, TB)             # pad so no grid step reads OOB
    R = TB // _LANES                     # sublane rows per step (multiple of 8)
    Rtot = B_pad // _LANES
    grid = (Rtot // R,)

    cparams = pltpu.CompilerParams(dimension_semantics=("parallel",))

    if ranges is None:
        K = 2 * M
        x = _pack([angles_pred, angles], B, B_pad)
        out = pl.pallas_call(
            partial(_rmspe_angle_kernel, perms, inv_sqrt_m),
            out_shape=jax.ShapeDtypeStruct((Rtot, _LANES), jnp.float32),
            grid=grid,
            in_specs=[pl.BlockSpec((K, R, _LANES), lambda i: (0, i, 0))],
            out_specs=pl.BlockSpec((R, _LANES), lambda i: (i, 0)),
            compiler_params=cparams,
        )(x)
        return out.reshape(-1)[:B]

    K = 4 * M
    x = _pack([angles_pred, angles, ranges_pred, ranges], B, B_pad)
    packed = pl.pallas_call(
        partial(_rmspe_full_kernel, perms, inv_sqrt_m, float(balance_factor)),
        out_shape=jax.ShapeDtypeStruct((3, Rtot, _LANES), jnp.float32),
        grid=grid,
        in_specs=[pl.BlockSpec((K, R, _LANES), lambda i: (0, i, 0))],
        out_specs=pl.BlockSpec((3, R, _LANES), lambda i: (0, i, 0)),
        compiler_params=cparams,
    )(x)
    packed = packed.reshape(3, -1)[:, :B]
    return packed[0], packed[1], packed[2]


# ----------------------------------------------------------------------------
# Pure numpy reference (mirrors the PyTorch forward)
# ----------------------------------------------------------------------------
def _reference(angles_pred, angles, ranges_pred=None, ranges=None,
               balance=BALANCE_FACTOR):
    ap = np.asarray(angles_pred, np.float32)
    a = np.asarray(angles, np.float32)
    B, M = ap.shape
    perms = list(permutations(range(M)))
    errs = ap[:, perms] - a[:, None, :]                         # (B, P, M)
    errs = (errs + np.pi / 2) % np.pi - np.pi / 2
    rms_a = np.sqrt(1.0 / M) * np.linalg.norm(errs, axis=-1)    # (B, P)
    min_idx = np.argmin(rms_a, axis=-1)
    rmspe_angle = rms_a[np.arange(B), min_idx]
    if ranges is None:
        return rmspe_angle
    rp = np.asarray(ranges_pred, np.float32)
    r = np.asarray(ranges, np.float32)
    proj = np.asarray(perms)[min_idx]                           # (B, M)
    rp_proj = np.take_along_axis(rp, proj, axis=1)
    err_r = rp_proj - r
    rmse_r = np.sqrt(1.0 / M) * np.linalg.norm(err_r, axis=-1)
    rmspe = balance * rmspe_angle + (1.0 - balance) * rmse_r
    return rmspe, rmspe_angle, rmse_r


if __name__ == "__main__":
    key = jax.random.PRNGKey(0)
    k1, k2, k3, k4 = jax.random.split(key, 4)
    B, M = 4, 3   # 3 sources -> 6 permutations

    angles_pred = jax.random.uniform(k1, (B, M), jnp.float32,
                                     minval=-np.pi / 2, maxval=np.pi / 2)
    angles = jax.random.uniform(k2, (B, M), jnp.float32,
                                minval=-np.pi / 2, maxval=np.pi / 2)
    ranges_pred = jax.random.uniform(k3, (B, M), jnp.float32, minval=1.0, maxval=10.0)
    ranges = jax.random.uniform(k4, (B, M), jnp.float32, minval=1.0, maxval=10.0)

    # Angles-only path (ranges=None): per-sample rmspe, shape (B,)
    rmspe = jax.block_until_ready(rmspe_loss(angles_pred, angles))
    ref = _reference(np.asarray(angles_pred), np.asarray(angles))
    np.testing.assert_allclose(np.asarray(rmspe), ref, rtol=1e-5, atol=1e-5)

    # Near-field path: (rmspe, rmspe_angle, rmse_ranges)
    outs = rmspe_loss(angles_pred, angles, ranges_pred, ranges,
                      balance_factor=BALANCE_FACTOR)
    outs = jax.block_until_ready(outs)
    refs = _reference(np.asarray(angles_pred), np.asarray(angles),
                      np.asarray(ranges_pred), np.asarray(ranges),
                      balance=BALANCE_FACTOR)
    for got, want in zip(outs, refs):
        np.testing.assert_allclose(np.asarray(got), want, rtol=1e-5, atol=1e-5)

    print("KERNEL_OK")
</pallas_src>

<mosaic_0001>
module attributes {stable_mosaic.version = 11 : i64} {
  func.func @_rmspe_angle_kernel(%arg0: i32, %arg1: memref<6x8x128xf32, #tpu.memory_space<vmem>>, %arg2: memref<8x128xf32, #tpu.memory_space<vmem>>) attributes {dimension_semantics = [#tpu.dimension_semantics<parallel>], iteration_bounds = array<i64: 1>, scalar_prefetch = 0 : i64, scratch_operands = 0 : i64, tpu.core_type = #tpu.core_type<tc>, window_params = [{transform_indices = @transform_0, window_bounds = array<i64: 6, 8, 128>}, {transform_indices = @transform_1, window_bounds = array<i64: 8, 128>}]} {
    %c0 = arith.constant 0 : index
    %c0_0 = arith.constant 0 : index
    %c0_1 = arith.constant 0 : index
    %0 = vector.load %arg1[%c0, %c0_0, %c0_1] : memref<6x8x128xf32, #tpu.memory_space<vmem>>, vector<1x8x128xf32>
    %1 = vector.shape_cast %0 : vector<1x8x128xf32> to vector<8x128xf32>
    %c1 = arith.constant 1 : index
    %c0_2 = arith.constant 0 : index
    %c0_3 = arith.constant 0 : index
    %2 = vector.load %arg1[%c1, %c0_2, %c0_3] : memref<6x8x128xf32, #tpu.memory_space<vmem>>, vector<1x8x128xf32>
    %3 = vector.shape_cast %2 : vector<1x8x128xf32> to vector<8x128xf32>
    %c2 = arith.constant 2 : index
    %c0_4 = arith.constant 0 : index
    %c0_5 = arith.constant 0 : index
    %4 = vector.load %arg1[%c2, %c0_4, %c0_5] : memref<6x8x128xf32, #tpu.memory_space<vmem>>, vector<1x8x128xf32>
    %5 = vector.shape_cast %4 : vector<1x8x128xf32> to vector<8x128xf32>
    %c3 = arith.constant 3 : index
    %c0_6 = arith.constant 0 : index
    %c0_7 = arith.constant 0 : index
    %6 = vector.load %arg1[%c3, %c0_6, %c0_7] : memref<6x8x128xf32, #tpu.memory_space<vmem>>, vector<1x8x128xf32>
    %7 = vector.shape_cast %6 : vector<1x8x128xf32> to vector<8x128xf32>
    %c4 = arith.constant 4 : index
    %c0_8 = arith.constant 0 : index
    %c0_9 = arith.constant 0 : index
    %8 = vector.load %arg1[%c4, %c0_8, %c0_9] : memref<6x8x128xf32, #tpu.memory_space<vmem>>, vector<1x8x128xf32>
    %9 = vector.shape_cast %8 : vector<1x8x128xf32> to vector<8x128xf32>
    %c5 = arith.constant 5 : index
    %c0_10 = arith.constant 0 : index
    %c0_11 = arith.constant 0 : index
    %10 = vector.load %arg1[%c5, %c0_10, %c0_11] : memref<6x8x128xf32, #tpu.memory_space<vmem>>, vector<1x8x128xf32>
    %11 = vector.shape_cast %10 : vector<1x8x128xf32> to vector<8x128xf32>
    %12 = arith.subf %1, %7 : vector<8x128xf32>
    %cst = arith.constant 1.57079637 : f32
    %13 = vector.broadcast %cst : f32 to vector<8x128xf32>
    %14 = arith.addf %12, %13 : vector<8x128xf32>
    %cst_12 = arith.constant 0.318309873 : f32
    %15 = vector.broadcast %cst_12 : f32 to vector<8x128xf32>
    %16 = arith.mulf %14, %15 : vector<8x128xf32>
    %17 = math.floor %16 : vector<8x128xf32>
    %cst_13 = arith.constant 3.14159274 : f32
    %18 = vector.broadcast %cst_13 : f32 to vector<8x128xf32>
    %19 = arith.mulf %18, %17 : vector<8x128xf32>
    %20 = arith.subf %14, %19 : vector<8x128xf32>
    %cst_14 = arith.constant 1.57079637 : f32
    %21 = vector.broadcast %cst_14 : f32 to vector<8x128xf32>
    %22 = arith.subf %20, %21 : vector<8x128xf32>
    %23 = arith.mulf %22, %22 : vector<8x128xf32>
    %24 = arith.subf %1, %9 : vector<8x128xf32>
    %cst_15 = arith.constant 1.57079637 : f32
    %25 = vector.broadcast %cst_15 : f32 to vector<8x128xf32>
    %26 = arith.addf %24, %25 : vector<8x128xf32>
    %cst_16 = arith.constant 0.318309873 : f32
    %27 = vector.broadcast %cst_16 : f32 to vector<8x128xf32>
    %28 = arith.mulf %26, %27 : vector<8x128xf32>
    %29 = math.floor %28 : vector<8x128xf32>
    %cst_17 = arith.constant 3.14159274 : f32
    %30 = vector.broadcast %cst_17 : f32 to vector<8x128xf32>
    %31 = arith.mulf %30, %29 : vector<8x128xf32>
    %32 = arith.subf %26, %31 : vector<8x128xf32>
    %cst_18 = arith.constant 1.57079637 : f32
    %33 = vector.broadcast %cst_18 : f32 to vector<8x128xf32>
    %34 = arith.subf %32, %33 : vector<8x128xf32>
    %35 = arith.mulf %34, %34 : vector<8x128xf32>
    %36 = arith.subf %1, %11 : vector<8x128xf32>
    %cst_19 = arith.constant 1.57079637 : f32
    %37 = vector.broadcast %cst_19 : f32 to vector<8x128xf32>
    %38 = arith.addf %36, %37 : vector<8x128xf32>
    %cst_20 = arith.constant 0.318309873 : f32
    %39 = vector.broadcast %cst_20 : f32 to vector<8x128xf32>
    %40 = arith.mulf %38, %39 : vector<8x128xf32>
    %41 = math.floor %40 : vector<8x128xf32>
    %cst_21 = arith.constant 3.14159274 : f32
    %42 = vector.broadcast %cst_21 : f32 to vector<8x128xf32>
    %43 = arith.mulf %42, %41 : vector<8x128xf32>
    %44 = arith.subf %38, %43 : vector<8x128xf32>
    %cst_22 = arith.constant 1.57079637 : f32
    %45 = vector.broadcast %cst_22 : f32 to vector<8x128xf32>
    %46 = arith.subf %44, %45 : vector<8x128xf32>
    %47 = arith.mulf %46, %46 : vector<8x128xf32>
    %48 = arith.subf %3, %7 : vector<8x128xf32>
    %cst_23 = arith.constant 1.57079637 : f32
    %49 = vector.broadcast %cst_23 : f32 to vector<8x128xf32>
    %50 = arith.addf %48, %49 : vector<8x128xf32>
    %cst_24 = arith.constant 0.318309873 : f32
    %51 = vector.broadcast %cst_24 : f32 to vector<8x128xf32>
    %52 = arith.mulf %50, %51 : vector<8x128xf32>
    %53 = math.floor %52 : vector<8x128xf32>
    %cst_25 = arith.constant 3.14159274 : f32
    %54 = vector.broadcast %cst_25 : f32 to vector<8x128xf32>
    %55 = arith.mulf %54, %53 : vector<8x128xf32>
    %56 = arith.subf %50, %55 : vector<8x128xf32>
    %cst_26 = arith.constant 1.57079637 : f32
    %57 = vector.broadcast %cst_26 : f32 to vector<8x128xf32>
    %58 = arith.subf %56, %57 : vector<8x128xf32>
    %59 = arith.mulf %58, %58 : vector<8x128xf32>
    %60 = arith.subf %3, %9 : vector<8x128xf32>
    %cst_27 = arith.constant 1.57079637 : f32
    %61 = vector.broadcast %cst_27 : f32 to vector<8x128xf32>
    %62 = arith.addf %60, %61 : vector<8x128xf32>
    %cst_28 = arith.constant 0.318309873 : f32
    %63 = vector.broadcast %cst_28 : f32 to vector<8x128xf32>
    %64 = arith.mulf %62, %63 : vector<8x128xf32>
    %65 = math.floor %64 : vector<8x128xf32>
    %cst_29 = arith.constant 3.14159274 : f32
    %66 = vector.broadcast %cst_29 : f32 to vector<8x128xf32>
    %67 = arith.mulf %66, %65 : vector<8x128xf32>
    %68 = arith.subf %62, %67 : vector<8x128xf32>
    %cst_30 = arith.constant 1.57079637 : f32
    %69 = vector.broadcast %cst_30 : f32 to vector<8x128xf32>
    %70 = arith.subf %68, %69 : vector<8x128xf32>
    %71 = arith.mulf %70, %70 : vector<8x128xf32>
    %72 = arith.subf %3, %11 : vector<8x128xf32>
    %cst_31 = arith.constant 1.57079637 : f32
    %73 = vector.broadcast %cst_31 : f32 to vector<8x128xf32>
    %74 = arith.addf %72, %73 : vector<8x128xf32>
    %cst_32 = arith.constant 0.318309873 : f32
    %75 = vector.broadcast %cst_32 : f32 to vector<8x128xf32>
    %76 = arith.mulf %74, %75 : vector<8x128xf32>
    %77 = math.floor %76 : vector<8x128xf32>
    %cst_33 = arith.constant 3.14159274 : f32
    %78 = vector.broadcast %cst_33 : f32 to vector<8x128xf32>
    %79 = arith.mulf %78, %77 : vector<8x128xf32>
    %80 = arith.subf %74, %79 : vector<8x128xf32>
    %cst_34 = arith.constant 1.57079637 : f32
    %81 = vector.broadcast %cst_34 : f32 to vector<8x128xf32>
    %82 = arith.subf %80, %81 : vector<8x128xf32>
    %83 = arith.mulf %82, %82 : vector<8x128xf32>
    %84 = arith.subf %5, %7 : vector<8x128xf32>
    %cst_35 = arith.constant 1.57079637 : f32
    %85 = vector.broadcast %cst_35 : f32 to vector<8x128xf32>
    %86 = arith.addf %84, %85 : vector<8x128xf32>
    %cst_36 = arith.constant 0.318309873 : f32
    %87 = vector.broadcast %cst_36 : f32 to vector<8x128xf32>
    %88 = arith.mulf %86, %87 : vector<8x128xf32>
    %89 = math.floor %88 : vector<8x128xf32>
    %cst_37 = arith.constant 3.14159274 : f32
    %90 = vector.broadcast %cst_37 : f32 to vector<8x128xf32>
    %91 = arith.mulf %90, %89 : vector<8x128xf32>
    %92 = arith.subf %86, %91 : vector<8x128xf32>
    %cst_38 = arith.constant 1.57079637 : f32
    %93 = vector.broadcast %cst_38 : f32 to vector<8x128xf32>
    %94 = arith.subf %92, %93 : vector<8x128xf32>
    %95 = arith.mulf %94, %94 : vector<8x128xf32>
    %96 = arith.subf %5, %9 : vector<8x128xf32>
    %cst_39 = arith.constant 1.57079637 : f32
    %97 = vector.broadcast %cst_39 : f32 to vector<8x128xf32>
    %98 = arith.addf %96, %97 : vector<8x128xf32>
    %cst_40 = arith.constant 0.318309873 : f32
    %99 = vector.broadcast %cst_40 : f32 to vector<8x128xf32>
    %100 = arith.mulf %98, %99 : vector<8x128xf32>
    %101 = math.floor %100 : vector<8x128xf32>
    %cst_41 = arith.constant 3.14159274 : f32
    %102 = vector.broadcast %cst_41 : f32 to vector<8x128xf32>
    %103 = arith.mulf %102, %101 : vector<8x128xf32>
    %104 = arith.subf %98, %103 : vector<8x128xf32>
    %cst_42 = arith.constant 1.57079637 : f32
    %105 = vector.broadcast %cst_42 : f32 to vector<8x128xf32>
    %106 = arith.subf %104, %105 : vector<8x128xf32>
    %107 = arith.mulf %106, %106 : vector<8x128xf32>
    %108 = arith.subf %5, %11 : vector<8x128xf32>
    %cst_43 = arith.constant 1.57079637 : f32
    %109 = vector.broadcast %cst_43 : f32 to vector<8x128xf32>
    %110 = arith.addf %108, %109 : vector<8x128xf32>
    %cst_44 = arith.constant 0.318309873 : f32
    %111 = vector.broadcast %cst_44 : f32 to vector<8x128xf32>
    %112 = arith.mulf %110, %111 : vector<8x128xf32>
    %113 = math.floor %112 : vector<8x128xf32>
    %cst_45 = arith.constant 3.14159274 : f32
    %114 = vector.broadcast %cst_45 : f32 to vector<8x128xf32>
    %115 = arith.mulf %114, %113 : vector<8x128xf32>
    %116 = arith.subf %110, %115 : vector<8x128xf32>
    %cst_46 = arith.constant 1.57079637 : f32
    %117 = vector.broadcast %cst_46 : f32 to vector<8x128xf32>
    %118 = arith.subf %116, %117 : vector<8x128xf32>
    %119 = arith.mulf %118, %118 : vector<8x128xf32>
    %120 = arith.addf %23, %71 : vector<8x128xf32>
    %121 = arith.addf %120, %119 : vector<8x128xf32>
    %122 = arith.addf %23, %107 : vector<8x128xf32>
    %123 = arith.addf %122, %83 : vector<8x128xf32>
    %124 = arith.minimumf %121, %123 : vector<8x128xf32>
    %125 = arith.addf %59, %35 : vector<8x128xf32>
    %126 = arith.addf %125, %119 : vector<8x128xf32>
    %127 = arith.minimumf %124, %126 : vector<8x128xf32>
    %128 = arith.addf %59, %107 : vector<8x128xf32>
    %129 = arith.addf %128, %47 : vector<8x128xf32>
    %130 = arith.minimumf %127, %129 : vector<8x128xf32>
    %131 = arith.addf %95, %35 : vector<8x128xf32>
    %132 = arith.addf %131, %83 : vector<8x128xf32>
    %133 = arith.minimumf %130, %132 : vector<8x128xf32>
    %134 = arith.addf %95, %71 : vector<8x128xf32>
    %135 = arith.addf %134, %47 : vector<8x128xf32>
    %136 = arith.minimumf %133, %135 : vector<8x128xf32>
    %137 = math.sqrt %136 : vector<8x128xf32>
    %cst_47 = arith.constant 0.577350259 : f32
    %138 = vector.broadcast %cst_47 : f32 to vector<8x128xf32>
    %139 = arith.mulf %137, %138 : vector<8x128xf32>
    %c0_48 = arith.constant 0 : index
    %c0_49 = arith.constant 0 : index
    %140 = vector.load %arg2[%c0_48, %c0_49] : memref<8x128xf32, #tpu.memory_space<vmem>>, vector<8x128xf32>
    tpu.vector_store %arg2[%c0_48, %c0_49], %139 {strides = array<i32>} : memref<8x128xf32, #tpu.memory_space<vmem>>, vector<8x128xf32>,
    return
  }
  func.func @transform_0(%arg0: i32) -> (i32, i32, i32) {
    %c0_i32 = arith.constant 0 : i32
    %c0_i32_0 = arith.constant 0 : i32
    %c0_i32_1 = arith.constant 0 : i32
    return %c0_i32, %arg0, %c0_i32_0 : i32, i32, i32
  }
  func.func @transform_1(%arg0: i32) -> (i32, i32) {
    %c0_i32 = arith.constant 0 : i32
    %c0_i32_0 = arith.constant 0 : i32
    return %arg0, %c0_i32 : i32, i32
  }
}

</mosaic_0001>

<llo_original>
// kernel: tpu_custom_call.1
$region0: #{tpu_custom_call.1}
  #allocation0 [shape = 'u32[]', space=smem, size = 0x4, offset = 0x4, fixed_abs, tag = 'smem constant byte address 0x4 - core index']
  #allocation1 [shape = 'u32[144,128]{1,0:T(1,128)}', space=vmem, size = 0x12000, scoped, tag = 'internal scratch']
  %s0 = inlined_call_operand.hbm [shape: f32[6,8,128], index: 0, kind: input, shape index: {}]
  %s1 = inlined_call_operand.hbm [shape: f32[8,128], index: 1, kind: output, shape index: {}]
  %s2 = sld [smem:[#allocation0]]
  $region18: #{tpu_custom_call.1} parent=0
    _
  %s4 = ssub.s32 1, %s2
  %s5 = scalar_select 0, %s4, %s2
  $region1: #{tpu_custom_call.1} parent=0
    #allocation2 [shape = 'u8[24576]{0}', space=vmem, size = 0x6000, scoped, tag = 'input window, operand 0, single buffered']
    #allocation3 [shape = 's32[1]{0}', space=sflag, size = 0x4, scoped, tag = 'scoped memory for tpu_custom_call.1']
    #allocation4 [shape = 's32[1]{0}', space=sflag, size = 0x4, scoped, tag = 'scoped memory for tpu_custom_call.1']
    #allocation5 [shape = 'u8[4096]{0}', space=vmem, size = 0x1000, scoped, tag = 'output window, operand 0, single buffered']
    %6 = vsyncpa [#allocation3], 0
    %7 = vsyncpa [#allocation4], 0
    // Predicated region
    $region2: #{tpu_custom_call.1} parent=1 // pred_check
      _
    $region3: #{tpu_custom_call.1} parent=1 // pred_check_branch
      %9 = sbr.rel (0) target = $region5
    $region4: #{tpu_custom_call.1} parent=1 // pred_region
      %s11 = ssub.s32 768, 768
      %12 = vsyncadd [#allocation3], %s11
      %s13 = sshll.u32 [#allocation2], 4
      %s14 = int_to_ptr.vmem [resolvable:$true] %s13
      %19 = dma.hbm_to_vmem [thread:$0]  %s0, 768, %s14, [#allocation3], 128, 128, 8
    $region5: #{tpu_custom_call.1} parent=1 // pred_fallthru
      _
    // Predicated region
    $region6: #{tpu_custom_call.1} parent=1 // pred_check
      _
    $region7: #{tpu_custom_call.1} parent=1 // pred_check_branch
      %21 = sbr.rel (0) target = $region9
    $region8: #{tpu_custom_call.1} parent=1 // pred_region
      %22 = dma.done [#allocation3], 768
    $region9: #{tpu_custom_call.1} parent=1 // pred_fallthru
      _
    %v23 = vld [vmem:[#allocation2] sm:$0xff]
    %s24 = scalar_lea.vmem [#allocation2], 8
    %v25 = vld [vmem:[%s24] sm:$0xff]
    %s26 = scalar_lea.vmem [#allocation2], 16
    %v27 = vld [vmem:[%s26] sm:$0xff]
    %s28 = scalar_lea.vmem [#allocation2], 24
    %v29 = vld [vmem:[%s28] sm:$0xff]
    %s30 = scalar_lea.vmem [#allocation2], 32
    %v31 = vld [vmem:[%s30] sm:$0xff]
    %s32 = scalar_lea.vmem [#allocation2], 40
    %v33 = vld [vmem:[%s32] sm:$0xff]
    %v34 = vsub.f32 %v23, %v29
    %v35 = vadd.f32 %v34, 1.5707964
    %v36 = vmul.f32 %v35, 0.31830987
    %v37 = vfloor.f32 %v36
    %v38 = vmul.f32 %v37, 3.1415927
    %v39 = vsub.f32 %v35, %v38
    %v40 = vsub.f32 %v39, 1.5707964
    %v41 = vmul.f32 %v40, %v40
    %v42 = vsub.f32 %v23, %v31
    %v43 = vadd.f32 %v42, 1.5707964
    %v44 = vmul.f32 %v43, 0.31830987
    %v45 = vfloor.f32 %v44
    %v46 = vmul.f32 %v45, 3.1415927
    %v47 = vsub.f32 %v43, %v46
    %v48 = vsub.f32 %v47, 1.5707964
    %v49 = vmul.f32 %v48, %v48
    %v50 = vsub.f32 %v23, %v33
    %v51 = vadd.f32 %v50, 1.5707964
    %v52 = vmul.f32 %v51, 0.31830987
    %v53 = vfloor.f32 %v52
    %v54 = vmul.f32 %v53, 3.1415927
    %v55 = vsub.f32 %v51, %v54
    %v56 = vsub.f32 %v55, 1.5707964
    %v57 = vmul.f32 %v56, %v56
    %v58 = vsub.f32 %v25, %v29
    %v59 = vadd.f32 %v58, 1.5707964
    %v60 = vmul.f32 %v59, 0.31830987
    %v61 = vfloor.f32 %v60
    %v62 = vmul.f32 %v61, 3.1415927
    %v63 = vsub.f32 %v59, %v62
    %v64 = vsub.f32 %v63, 1.5707964
    %v65 = vmul.f32 %v64, %v64
    %v66 = vsub.f32 %v25, %v31
    %v67 = vadd.f32 %v66, 1.5707964
    %v68 = vmul.f32 %v67, 0.31830987
    %v69 = vfloor.f32 %v68
    %v70 = vmul.f32 %v69, 3.1415927
    %v71 = vsub.f32 %v67, %v70
    %v72 = vsub.f32 %v71, 1.5707964
    %v73 = vmul.f32 %v72, %v72
    %v74 = vsub.f32 %v25, %v33
    %v75 = vadd.f32 %v74, 1.5707964
    %v76 = vmul.f32 %v75, 0.31830987
    %v77 = vfloor.f32 %v76
    %v78 = vmul.f32 %v77, 3.1415927
    %v79 = vsub.f32 %v75, %v78
    %v80 = vsub.f32 %v79, 1.5707964
    %v81 = vmul.f32 %v80, %v80
    %v82 = vsub.f32 %v27, %v29
    %v83 = vadd.f32 %v82, 1.5707964
    %v84 = vmul.f32 %v83, 0.31830987
    %v85 = vfloor.f32 %v84
    %v86 = vmul.f32 %v85, 3.1415927
    %v87 = vsub.f32 %v83, %v86
    %v88 = vsub.f32 %v87, 1.5707964
    %v89 = vmul.f32 %v88, %v88
    %v90 = vsub.f32 %v27, %v31
    %v91 = vadd.f32 %v90, 1.5707964
    %v92 = vmul.f32 %v91, 0.31830987
    %v93 = vfloor.f32 %v92
    %v94 = vmul.f32 %v93, 3.1415927
    %v95 = vsub.f32 %v91, %v94
    %v96 = vsub.f32 %v95, 1.5707964
    %v97 = vmul.f32 %v96, %v96
    %v98 = vsub.f32 %v27, %v33
    %v99 = vadd.f32 %v98, 1.5707964
    %v100 = vmul.f32 %v99, 0.31830987
    %v101 = vfloor.f32 %v100
    %v102 = vmul.f32 %v101, 3.1415927
    %v103 = vsub.f32 %v99, %v102
    %v104 = vsub.f32 %v103, 1.5707964
    %v105 = vmul.f32 %v104, %v104
    %v106 = vadd.f32 %v41, %v73
    %v107 = vadd.f32 %v106, %v105
    %v108 = vadd.f32 %v41, %v97
    %v109 = vadd.f32 %v108, %v81
    %v110 = vmin.f32 %v107, %v109
    %v111 = vadd.f32 %v65, %v49
    %v112 = vadd.f32 %v111, %v105
    %v113 = vmin.f32 %v110, %v112
    %v114 = vadd.f32 %v65, %v97
    %v115 = vadd.f32 %v114, %v57
    %v116 = vmin.f32 %v113, %v115
    %v117 = vadd.f32 %v89, %v49
    %v118 = vadd.f32 %v117, %v81
    %v119 = vmin.f32 %v116, %v118
    %v120 = vadd.f32 %v89, %v73
    %v121 = vadd.f32 %v120, %v57
    %v122 = vmin.f32 %v119, %v121
    %v123 = vrsqrt.pop %v122
    %v124 = vmul.f32 %v122, %v123
    %vm125 = vcmp.eq.f32.partialorder %v122, inf
    %v126 = vsel %vm125, %v122, %v124
    %vm127 = vcmp.eq.f32.partialorder %v122, 0.0
    %v128 = vand.u32 %v122, 2147483648
    %v129 = vsel %vm127, %v128, %v126
    %v130 = vmul.f32 %v129, 0.57735026
    %131 = vst [vmem:[#allocation5] sm:$0xff] %v130
    // Predicated region
    $region10: #{tpu_custom_call.1} parent=1 // pred_check
      _
    $region11: #{tpu_custom_call.1} parent=1 // pred_check_branch
      %133 = sbr.rel (0) target = $region13
    $region12: #{tpu_custom_call.1} parent=1 // pred_region
      %s135 = ssub.s32 128, 128
      %136 = vsyncadd [#allocation4], %s135
      %s138 = sshll.u32 [#allocation5], 4
      %s139 = int_to_ptr.vmem [resolvable:$true] %s138
      %141 = dma.vmem_to_hbm [thread:$0]  %s139, 128, %s1, [#allocation4]
    $region13: #{tpu_custom_call.1} parent=1 // pred_fallthru
      _
    // Predicated region
    $region14: #{tpu_custom_call.1} parent=1 // pred_check
      _
    $region15: #{tpu_custom_call.1} parent=1 // pred_check_branch
      %143 = sbr.rel (0) target = $region17
    $region16: #{tpu_custom_call.1} parent=1 // pred_region
      %144 = dma.done [#allocation4], 128
    $region17: #{tpu_custom_call.1} parent=1 // pred_fallthru
      _
    %145 = vsyncpa [#allocation3], 1
    %146 = vsyncpa [#allocation4], 1

</llo_original>
